<compile_context>
chip_gen: v6e
topology: v6e:2x2x1
jax: 0.10.0
libtpu: 0.0.40
codegen_flags: <defaults>
</compile_context>

<pallas_src>
import functools

import jax
import jax.numpy as jnp
from jax.experimental import pallas as pl
from jax.experimental.pallas import tpu as pltpu

LANE = 128


def _round_up(x, m):
    return (x + m - 1) // m * m


def make_mlp_kernel(precision):
    def mlp_kernel(x_ref, w1_ref, b1_ref, w2_ref, b2_ref, w3_ref, b3_ref, o_ref):
        dot = functools.partial(
            jnp.dot, preferred_element_type=jnp.float32, precision=precision)

        # Layer 1: Linear + SiLU (accumulate + activate in fp32).
        h = dot(x_ref[...], w1_ref[...]) + b1_ref[...]
        h = h * jax.nn.sigmoid(h)

        # Layer 2: Linear + SiLU.
        h = dot(h.astype(w2_ref.dtype), w2_ref[...]) + b2_ref[...]
        h = h * jax.nn.sigmoid(h)

        # Layer 3: Linear only (final SiLU was popped in __init__).
        out = dot(h.astype(w3_ref.dtype), w3_ref[...]) + b3_ref[...]
        o_ref[...] = out.astype(o_ref.dtype)

    return mlp_kernel


def init_params(key, policy_layers):
    """Deterministic init; mirrors nn.Linear's uniform(-1/sqrt(in), 1/sqrt(in)).
    Weights stored (in, out) so the kernel computes x @ W + b (== PyTorch
    x @ W.T + b with W of shape (out, in))."""
    params = []
    for w_in, w_out in zip(policy_layers, policy_layers[1:]):
        key, kw, kb = jax.random.split(key, 3)
        bound = 1.0 / jnp.sqrt(jnp.float32(w_in))
        W = jax.random.uniform(kw, (w_in, w_out), jnp.float32, -bound, bound)
        b = jax.random.uniform(kb, (1, w_out), jnp.float32, -bound, bound)
        params.append((W, b))
    return params


def prepare_params(params, compute_dtype=jnp.bfloat16, lane=LANE):
    """One-time prep: zero-pad every layer's feature dims up to a multiple of
    128 lanes (hidden 64 -> 128, out 8 -> 128), cast weights to the MXU compute
    dtype, keep biases fp32 (they are added to the fp32 accumulator).
    Zero padding is exact: padded hidden units see bias 0 -> SiLU(0) = 0 and
    feed zero weight rows, so real outputs are unchanged."""
    out_dim = params[-1][0].shape[1]
    padded = []
    prev_out_pad = params[0][0].shape[0]          # obs_dim: left unpadded
    for W, b in params:
        in_dim, odim = W.shape
        out_pad = _round_up(odim, lane)
        Wp = jnp.zeros((prev_out_pad, out_pad), compute_dtype)
        Wp = Wp.at[:in_dim, :odim].set(W.astype(compute_dtype))
        bp = jnp.zeros((1, out_pad), jnp.float32)
        bp = bp.at[:, :odim].set(b.reshape(1, -1).astype(jnp.float32))
        padded.append((Wp, bp))
        prev_out_pad = out_pad
    return padded, out_dim


def simple_bc_agent_forward(x, prepped, *, block_b=512):
    """x: (B, obs_dim) fp32.  prepped: output of prepare_params."""
    padded_params, out_dim = prepped
    (w1, b1), (w2, b2), (w3, b3) = padded_params
    compute_dtype = w1.dtype
    B, obs_dim = x.shape
    out_pad = w3.shape[1]

    # Batch tiling: TB rows per grid step, batch padded to whole tiles.
    tb = min(block_b, _round_up(B, 8))
    b_pad = _round_up(B, tb)
    xp = x.astype(compute_dtype)
    if b_pad != B:
        xp = jnp.pad(xp, ((0, b_pad - B), (0, 0)))
    grid = (b_pad // tb,)

    precision = (jax.lax.Precision.HIGHEST
                 if jnp.dtype(compute_dtype) == jnp.float32
                 else jax.lax.Precision.DEFAULT)

    h1, h2 = w1.shape[1], w2.shape[1]
    itemsize = jnp.dtype(compute_dtype).itemsize
    cost = pl.CostEstimate(
        flops=2 * b_pad * (obs_dim * h1 + h1 * h2 + h2 * out_pad),
        transcendentals=b_pad * (h1 + h2),
        bytes_accessed=(xp.size * itemsize
                        + sum(w.size * itemsize + b.size * 4
                              for w, b in padded_params)
                        + b_pad * out_pad * 4),
    )

    # Weights/biases: full block, constant index_map -> VMEM-resident, fetched
    # once rather than per batch tile.
    resident = lambda arr: pl.BlockSpec(arr.shape, lambda i: (0, 0))

    out = pl.pallas_call(
        make_mlp_kernel(precision),
        out_shape=jax.ShapeDtypeStruct((b_pad, out_pad), jnp.float32),
        grid=grid,
        in_specs=[
            pl.BlockSpec((tb, obs_dim), lambda i: (i, 0)),   # batch-tiled x
            resident(w1), resident(b1),
            resident(w2), resident(b2),
            resident(w3), resident(b3),
        ],
        out_specs=pl.BlockSpec((tb, out_pad), lambda i: (i, 0)),
        compiler_params=pltpu.CompilerParams(
            dimension_semantics=("parallel",)),
        cost_estimate=cost,
    )(xp, w1, b1, w2, b2, w3, b3)

    return out[:B, :out_dim]


def reference_forward(x, params, cast_dtype=None):
    """Pure-JAX reference matching the PyTorch module.  With cast_dtype set it
    also mimics the kernel's bf16-input / fp32-accumulate numerics."""
    def maybe_cast(a):
        return a if cast_dtype is None else a.astype(cast_dtype).astype(jnp.float32)

    h = x
    n = len(params)
    for i, (W, b) in enumerate(params):
        h = jnp.dot(maybe_cast(h), maybe_cast(W),
                    precision=jax.lax.Precision.HIGHEST) + b
        if i < n - 1:
            h = h * jax.nn.sigmoid(h)
    return h


if __name__ == "__main__":
    # env.observation_space.shape[-1] = 24, env.action_space.shape[-1] = 4
    obs_dim, act_dim = 24, 4
    policy_layers = [obs_dim, 64, 64, act_dim * 2]

    key = jax.random.PRNGKey(0)
    key, kx, kx2 = jax.random.split(key, 3)
    params = init_params(key, policy_layers)

    # --- small batch, bf16 MXU path (default perf config) ------------------
    batch = 8
    x = jax.random.normal(kx, (batch, obs_dim), jnp.float32)
    prepped_bf16 = prepare_params(params, compute_dtype=jnp.bfloat16)
    out = jax.block_until_ready(simple_bc_agent_forward(x, prepped_bf16))
    ref = reference_forward(x, params, cast_dtype=jnp.bfloat16)
    assert out.shape == (batch, act_dim * 2)
    assert jnp.allclose(out, ref, atol=1e-4, rtol=1e-4)

    # --- small batch, fp32 path: strict parity with the PyTorch module -----
    prepped_f32 = prepare_params(params, compute_dtype=jnp.float32)
    out32 = jax.block_until_ready(simple_bc_agent_forward(x, prepped_f32))
    ref32 = reference_forward(x, params)
    assert jnp.allclose(out32, ref32, atol=1e-5, rtol=1e-5)

    # --- larger, non-divisible batch exercises the multi-tile grid path ----
    big_batch = 1000                      # -> padded to 1024, grid=(2,)
    xb = jax.random.normal(kx2, (big_batch, obs_dim), jnp.float32)
    outb = jax.block_until_ready(simple_bc_agent_forward(xb, prepped_bf16))
    refb = reference_forward(xb, params, cast_dtype=jnp.bfloat16)
    assert outb.shape == (big_batch, act_dim * 2)
    assert jnp.allclose(outb, refb, atol=1e-4, rtol=1e-4)

    print("KERNEL_OK")
</pallas_src>

<mosaic_0001>
module attributes {stable_mosaic.version = 11 : i64} {
  func.func @mlp_kernel(%arg0: i32, %arg1: memref<8x24xbf16, #tpu.memory_space<vmem>>, %arg2: memref<24x128xbf16, #tpu.memory_space<vmem>>, %arg3: memref<1x128xf32, #tpu.memory_space<vmem>>, %arg4: memref<128x128xbf16, #tpu.memory_space<vmem>>, %arg5: memref<1x128xf32, #tpu.memory_space<vmem>>, %arg6: memref<128x128xbf16, #tpu.memory_space<vmem>>, %arg7: memref<1x128xf32, #tpu.memory_space<vmem>>, %arg8: memref<8x128xf32, #tpu.memory_space<vmem>>) attributes {dimension_semantics = [#tpu.dimension_semantics<parallel>], iteration_bounds = array<i64: 1>, scalar_prefetch = 0 : i64, scratch_operands = 0 : i64, tpu.core_type = #tpu.core_type<tc>, window_params = [{transform_indices = @transform_0, window_bounds = array<i64: 8, 24>}, {pipeline_mode = #tpu.pipeline_mode<synchronous>, transform_indices = @transform_1, window_bounds = array<i64: 24, 128>}, {pipeline_mode = #tpu.pipeline_mode<synchronous>, transform_indices = @transform_2, window_bounds = array<i64: 1, 128>}, {pipeline_mode = #tpu.pipeline_mode<synchronous>, transform_indices = @transform_3, window_bounds = array<i64: 128, 128>}, {pipeline_mode = #tpu.pipeline_mode<synchronous>, transform_indices = @transform_4, window_bounds = array<i64: 1, 128>}, {pipeline_mode = #tpu.pipeline_mode<synchronous>, transform_indices = @transform_5, window_bounds = array<i64: 128, 128>}, {pipeline_mode = #tpu.pipeline_mode<synchronous>, transform_indices = @transform_6, window_bounds = array<i64: 1, 128>}, {transform_indices = @transform_7, window_bounds = array<i64: 8, 128>}]} {
    %c0 = arith.constant 0 : index
    %c0_0 = arith.constant 0 : index
    %0 = vector.load %arg1[%c0, %c0_0] : memref<8x24xbf16, #tpu.memory_space<vmem>>, vector<8x24xbf16>
    %c0_1 = arith.constant 0 : index
    %c0_2 = arith.constant 0 : index
    %1 = vector.load %arg2[%c0_1, %c0_2] : memref<24x128xbf16, #tpu.memory_space<vmem>>, vector<24x128xbf16>
    %cst = arith.constant dense<0.000000e+00> : vector<8x128xf32>
    %2 = tpu.matmul %0, %1, %cst {dimension_numbers = #tpu.dot_dimension_numbers<[1], [0], [0], [1], [0, 0, 1, 1], [], []>} : vector<8x24xbf16>, vector<24x128xbf16>, vector<8x128xf32> -> vector<8x128xf32>
    %c0_3 = arith.constant 0 : index
    %c0_4 = arith.constant 0 : index
    %3 = vector.load %arg3[%c0_3, %c0_4] : memref<1x128xf32, #tpu.memory_space<vmem>>, vector<1x128xf32>
    %4 = vector.broadcast %3 : vector<1x128xf32> to vector<8x128xf32>
    %5 = arith.addf %2, %4 : vector<8x128xf32>
    %6 = arith.negf %5 : vector<8x128xf32>
    %7 = math.exp %6 : vector<8x128xf32>
    %cst_5 = arith.constant 1.000000e+00 : f32
    %8 = vector.broadcast %cst_5 : f32 to vector<8x128xf32>
    %9 = arith.addf %8, %7 : vector<8x128xf32>
    %10 = arith.divf %8, %9 : vector<8x128xf32>
    %11 = arith.mulf %5, %10 : vector<8x128xf32>
    %12 = arith.truncf %11 : vector<8x128xf32> to vector<8x128xbf16>
    %c0_6 = arith.constant 0 : index
    %c0_7 = arith.constant 0 : index
    %13 = vector.load %arg4[%c0_6, %c0_7] : memref<128x128xbf16, #tpu.memory_space<vmem>>, vector<128x128xbf16>
    %cst_8 = arith.constant dense<0.000000e+00> : vector<8x128xf32>
    %14 = tpu.matmul %12, %13, %cst_8 {dimension_numbers = #tpu.dot_dimension_numbers<[1], [0], [0], [1], [0, 0, 1, 1], [], []>} : vector<8x128xbf16>, vector<128x128xbf16>, vector<8x128xf32> -> vector<8x128xf32>
    %c0_9 = arith.constant 0 : index
    %c0_10 = arith.constant 0 : index
    %15 = vector.load %arg5[%c0_9, %c0_10] : memref<1x128xf32, #tpu.memory_space<vmem>>, vector<1x128xf32>
    %16 = vector.broadcast %15 : vector<1x128xf32> to vector<8x128xf32>
    %17 = arith.addf %14, %16 : vector<8x128xf32>
    %18 = arith.negf %17 : vector<8x128xf32>
    %19 = math.exp %18 : vector<8x128xf32>
    %cst_11 = arith.constant 1.000000e+00 : f32
    %20 = vector.broadcast %cst_11 : f32 to vector<8x128xf32>
    %21 = arith.addf %20, %19 : vector<8x128xf32>
    %22 = arith.divf %20, %21 : vector<8x128xf32>
    %23 = arith.mulf %17, %22 : vector<8x128xf32>
    %24 = arith.truncf %23 : vector<8x128xf32> to vector<8x128xbf16>
    %c0_12 = arith.constant 0 : index
    %c0_13 = arith.constant 0 : index
    %25 = vector.load %arg6[%c0_12, %c0_13] : memref<128x128xbf16, #tpu.memory_space<vmem>>, vector<128x128xbf16>
    %cst_14 = arith.constant dense<0.000000e+00> : vector<8x128xf32>
    %26 = tpu.matmul %24, %25, %cst_14 {dimension_numbers = #tpu.dot_dimension_numbers<[1], [0], [0], [1], [0, 0, 1, 1], [], []>} : vector<8x128xbf16>, vector<128x128xbf16>, vector<8x128xf32> -> vector<8x128xf32>
    %c0_15 = arith.constant 0 : index
    %c0_16 = arith.constant 0 : index
    %27 = vector.load %arg7[%c0_15, %c0_16] : memref<1x128xf32, #tpu.memory_space<vmem>>, vector<1x128xf32>
    %28 = vector.broadcast %27 : vector<1x128xf32> to vector<8x128xf32>
    %29 = arith.addf %26, %28 : vector<8x128xf32>
    %c0_17 = arith.constant 0 : index
    %c0_18 = arith.constant 0 : index
    %30 = vector.load %arg8[%c0_17, %c0_18] : memref<8x128xf32, #tpu.memory_space<vmem>>, vector<8x128xf32>
    tpu.vector_store %arg8[%c0_17, %c0_18], %29 {strides = array<i32>} : memref<8x128xf32, #tpu.memory_space<vmem>>, vector<8x128xf32>,
    return
  }
  func.func @transform_0(%arg0: i32) -> (i32, i32) {
    %c0_i32 = arith.constant 0 : i32
    %c0_i32_0 = arith.constant 0 : i32
    return %arg0, %c0_i32 : i32, i32
  }
  func.func @transform_1(%arg0: i32) -> (i32, i32) {
    %c0_i32 = arith.constant 0 : i32
    %c0_i32_0 = arith.constant 0 : i32
    %c0_i32_1 = arith.constant 0 : i32
    return %c0_i32, %c0_i32_0 : i32, i32
  }
  func.func @transform_2(%arg0: i32) -> (i32, i32) {
    %c0_i32 = arith.constant 0 : i32
    %c0_i32_0 = arith.constant 0 : i32
    %c0_i32_1 = arith.constant 0 : i32
    return %c0_i32, %c0_i32_0 : i32, i32
  }
  func.func @transform_3(%arg0: i32) -> (i32, i32) {
    %c0_i32 = arith.constant 0 : i32
    %c0_i32_0 = arith.constant 0 : i32
    %c0_i32_1 = arith.constant 0 : i32
    return %c0_i32, %c0_i32_0 : i32, i32
  }
  func.func @transform_4(%arg0: i32) -> (i32, i32) {
    %c0_i32 = arith.constant 0 : i32
    %c0_i32_0 = arith.constant 0 : i32
    %c0_i32_1 = arith.constant 0 : i32
    return %c0_i32, %c0_i32_0 : i32, i32
  }
  func.func @transform_5(%arg0: i32) -> (i32, i32) {
    %c0_i32 = arith.constant 0 : i32
    %c0_i32_0 = arith.constant 0 : i32
    %c0_i32_1 = arith.constant 0 : i32
    return %c0_i32, %c0_i32_0 : i32, i32
  }
  func.func @transform_6(%arg0: i32) -> (i32, i32) {
    %c0_i32 = arith.constant 0 : i32
    %c0_i32_0 = arith.constant 0 : i32
    %c0_i32_1 = arith.constant 0 : i32
    return %c0_i32, %c0_i32_0 : i32, i32
  }
  func.func @transform_7(%arg0: i32) -> (i32, i32) {
    %c0_i32 = arith.constant 0 : i32
    %c0_i32_0 = arith.constant 0 : i32
    return %arg0, %c0_i32 : i32, i32
  }
}

</mosaic_0001>

<llo_original>
// kernel: tpu_custom_call.1
$region0: #{tpu_custom_call.1}
  #allocation0 [shape = 'u32[]', space=smem, size = 0x4, offset = 0x4, fixed_abs, tag = 'smem constant byte address 0x4 - core index']
  #allocation1 [shape = 'u32[144,128]{1,0:T(1,128)}', space=vmem, size = 0x12000, scoped, tag = 'internal scratch']
  %s0 = inlined_call_operand.hbm [shape: bf16[8,24], index: 0, kind: input, shape index: {}]
  %s1 = inlined_call_operand.hbm [shape: bf16[24,128], index: 1, kind: input, shape index: {}]
  %s2 = inlined_call_operand.vmem [shape: f32[1,128], index: 2, kind: input, shape index: {}]
  %s3 = inlined_call_operand.hbm [shape: bf16[128,128], index: 3, kind: input, shape index: {}]
  %s4 = inlined_call_operand.vmem [shape: f32[1,128], index: 4, kind: input, shape index: {}]
  %s5 = inlined_call_operand.hbm [shape: bf16[128,128], index: 5, kind: input, shape index: {}]
  %s6 = inlined_call_operand.vmem [shape: f32[1,128], index: 6, kind: input, shape index: {}]
  %s7 = inlined_call_operand.hbm [shape: f32[8,128], index: 7, kind: output, shape index: {}]
  %s8 = sld [smem:[#allocation0]]
  $region54: #{tpu_custom_call.1} parent=0
    _
  %s10 = ssub.s32 1, %s8
  %s11 = scalar_select 0, %s10, %s8
  $region1: #{tpu_custom_call.1} parent=0
    #allocation2 [shape = 'u8[2048]{0}', space=vmem, size = 0x800, scoped, tag = 'input window, operand 0, single buffered']
    #allocation3 [shape = 's32[1]{0}', space=sflag, size = 0x4, scoped, tag = 'scoped memory for tpu_custom_call.1']
    #allocation4 [shape = 's32[1]{0}', space=sflag, size = 0x4, scoped, tag = 'scoped memory for tpu_custom_call.1']
    #allocation5 [shape = 'u8[6144]{0}', space=vmem, size = 0x1800, scoped, tag = 'input window, operand 1, single buffered']
    #allocation6 [shape = 's32[1]{0}', space=sflag, size = 0x4, scoped, tag = 'scoped memory for tpu_custom_call.1']
    #allocation7 [shape = 'u8[32768]{0}', space=vmem, size = 0x8000, scoped, tag = 'input window, operand 3, single buffered']
    #allocation8 [shape = 'u8[32768]{0}', space=vmem, size = 0x8000, scoped, tag = 'input window, operand 5, single buffered']
    #allocation9 [shape = 's32[1]{0}', space=sflag, size = 0x4, scoped, tag = 'scoped memory for tpu_custom_call.1']
    #allocation10 [shape = 'u8[4096]{0}', space=vmem, size = 0x1000, scoped, tag = 'output window, operand 0, single buffered']
    %12 = vsyncpa [#allocation3], 0
    %13 = vsyncpa [#allocation6], 0
    %14 = vsyncpa [#allocation9], 0
    %15 = vsyncpa [#allocation4], 0
    // Predicated region
    $region2: #{tpu_custom_call.1} parent=1 // pred_check
      _
    $region3: #{tpu_custom_call.1} parent=1 // pred_check_branch
      %17 = sbr.rel (0) target = $region5
    $region4: #{tpu_custom_call.1} parent=1 // pred_region
      %s19 = ssub.s32 64, 64
      %20 = vsyncadd [#allocation3], %s19
      %s22 = sshll.u32 [#allocation2], 4
      %s23 = int_to_ptr.vmem [resolvable:$true] %s22
      %25 = dma.hbm_to_vmem [thread:$0]  %s0, 64, %s23, [#allocation3]
    $region5: #{tpu_custom_call.1} parent=1 // pred_fallthru
      _
    // Predicated region
    $region6: #{tpu_custom_call.1} parent=1 // pred_check
      _
    $region7: #{tpu_custom_call.1} parent=1 // pred_check_branch
      %27 = sbr.rel (0) target = $region9
    $region8: #{tpu_custom_call.1} parent=1 // pred_region
      %s29 = ssub.s32 192, 192
      %30 = vsyncadd [#allocation6], %s29
      %s31 = sshll.u32 [#allocation5], 4
      %s32 = int_to_ptr.vmem [resolvable:$true] %s31
      %37 = dma.hbm_to_vmem [thread:$0]  %s1, 192, %s32, [#allocation6], 64, 64, 4
    $region9: #{tpu_custom_call.1} parent=1 // pred_fallthru
      _
    // Predicated region
    $region10: #{tpu_custom_call.1} parent=1 // pred_check
      _
    $region11: #{tpu_custom_call.1} parent=1 // pred_check_branch
      %39 = sbr.rel (0) target = $region13
    $region12: #{tpu_custom_call.1} parent=1 // pred_region
      _
    $region13: #{tpu_custom_call.1} parent=1 // pred_fallthru
      _
    // Predicated region
    $region14: #{tpu_custom_call.1} parent=1 // pred_check
      _
    $region15: #{tpu_custom_call.1} parent=1 // pred_check_branch
      %41 = sbr.rel (0) target = $region17
    $region16: #{tpu_custom_call.1} parent=1 // pred_region
      %s43 = ssub.s32 1024, 1024
      %44 = vsyncadd [#allocation6], %s43
      %s45 = sshll.u32 [#allocation7], 4
      %s46 = int_to_ptr.vmem [resolvable:$true] %s45
      %51 = dma.hbm_to_vmem [thread:$0]  %s3, 1024, %s46, [#allocation6], 64, 64, 4
    $region17: #{tpu_custom_call.1} parent=1 // pred_fallthru
      _
    // Predicated region
    $region18: #{tpu_custom_call.1} parent=1 // pred_check
      _
    $region19: #{tpu_custom_call.1} parent=1 // pred_check_branch
      %53 = sbr.rel (0) target = $region21
    $region20: #{tpu_custom_call.1} parent=1 // pred_region
      _
    $region21: #{tpu_custom_call.1} parent=1 // pred_fallthru
      _
    // Predicated region
    $region22: #{tpu_custom_call.1} parent=1 // pred_check
      _
    $region23: #{tpu_custom_call.1} parent=1 // pred_check_branch
      %55 = sbr.rel (0) target = $region25
    $region24: #{tpu_custom_call.1} parent=1 // pred_region
      %s57 = ssub.s32 1024, 1024
      %58 = vsyncadd [#allocation9], %s57
      %s59 = sshll.u32 [#allocation8], 4
      %s60 = int_to_ptr.vmem [resolvable:$true] %s59
      %65 = dma.hbm_to_vmem [thread:$0]  %s5, 1024, %s60, [#allocation9], 64, 64, 4
    $region25: #{tpu_custom_call.1} parent=1 // pred_fallthru
      _
    // Predicated region
    $region26: #{tpu_custom_call.1} parent=1 // pred_check
      _
    $region27: #{tpu_custom_call.1} parent=1 // pred_check_branch
      %67 = sbr.rel (0) target = $region29
    $region28: #{tpu_custom_call.1} parent=1 // pred_region
      _
    $region29: #{tpu_custom_call.1} parent=1 // pred_fallthru
      _
    // Predicated region
    $region30: #{tpu_custom_call.1} parent=1 // pred_check
      _
    $region31: #{tpu_custom_call.1} parent=1 // pred_check_branch
      %69 = sbr.rel (0) target = $region33
    $region32: #{tpu_custom_call.1} parent=1 // pred_region
      %70 = dma.done [#allocation3], 64
    $region33: #{tpu_custom_call.1} parent=1 // pred_fallthru
      _
    // Predicated region
    $region34: #{tpu_custom_call.1} parent=1 // pred_check
      _
    $region35: #{tpu_custom_call.1} parent=1 // pred_check_branch
      %72 = sbr.rel (0) target = $region37
    $region36: #{tpu_custom_call.1} parent=1 // pred_region
      %73 = dma.done [#allocation6], 192
    $region37: #{tpu_custom_call.1} parent=1 // pred_fallthru
      _
    // Predicated region
    $region38: #{tpu_custom_call.1} parent=1 // pred_check
      _
    $region39: #{tpu_custom_call.1} parent=1 // pred_check_branch
      %75 = sbr.rel (0) target = $region41
    $region40: #{tpu_custom_call.1} parent=1 // pred_region
      %76 = dma.done [#allocation6], 1024
    $region41: #{tpu_custom_call.1} parent=1 // pred_fallthru
      _
    // Predicated region
    $region42: #{tpu_custom_call.1} parent=1 // pred_check
      _
    $region43: #{tpu_custom_call.1} parent=1 // pred_check_branch
      %78 = sbr.rel (0) target = $region45
    $region44: #{tpu_custom_call.1} parent=1 // pred_region
      %79 = dma.done [#allocation9], 1024
    $region45: #{tpu_custom_call.1} parent=1 // pred_fallthru
      _
    %v81 = vld [vmem:[#allocation2] sm:$0xf]
    %v82 = vld [vmem:[#allocation5] sm:$0xf]
    %v83 = vld [vmem:[#allocation5 + $0x4] sm:$0xf]
    %v84 = vld [vmem:[#allocation5 + $0x8] sm:$0xf]
    %v85 = vld [vmem:[%s2] sm:$0x1]
    %v87 = vlaneseq
    %v88 = vshrl.u32 %v87, 7
    %v89 = vsub.s32 0, %v88
    %v90 = vrot.slane %v85, %v89
    %v95 = vunpack.c.l.b16 %v82
    %v96 = vunpack.c.l.b16 %v83
    %v97 = vunpack.c.l.b16 %v84
    %v98 = vpack.c.b16 %v96, %v95
    %v99 = vpack.c.b16 %v97, %v97
    %vm101 = vcmask 195584
    %v103 = vsel %vm101, %v81, 0
    %vm105 = vcmask 1043456
    %v107 = vsel %vm105, %v99, 0
    %109 = vmatprep.subr.bf16.mxu0 0
    %110 = vmatpush1.bf16.msra.mxu0 0
    %111 = vmatprep.subr.bf16.mxu0 0
    %112 = vmatpush1.bf16.msra.mxu0 0
    %113 = vmatprep.subr.bf16.mxu0 0
    %114 = vmatpush1.bf16.msra.mxu0 0
    %115 = vmatprep.subr.bf16.mxu0 0
    %116 = vmatpush1.bf16.msra.mxu0 0
    %117 = vmatprep.subr.bf16.mxu0 0
    %118 = vmatpush1.bf16.msra.mxu0 0
    %119 = vmatprep.subr.bf16.mxu0 0
    %120 = vmatpush1.bf16.msra.mxu0 0
    %121 = vmatprep.subr.bf16.mxu0 0
    %122 = vmatpush1.bf16.msra.mxu0 %v107
    %123 = vmatprep.subr.bf16.mxu0 0
    %124 = vmatpush1.bf16.msra.mxu0 %v98
    %125 = vmatprep.subr.bf16.mxu0 0
    %126 = vmatpush2.bf16.msra.mxu0 0
    %127 = vmatprep.subr.bf16.mxu0 0
    %128 = vmatpush2.bf16.msra.mxu0 0
    %129 = vmatprep.subr.bf16.mxu0 0
    %130 = vmatpush2.bf16.msra.mxu0 0
    %131 = vmatprep.subr.bf16.mxu0 0
    %132 = vmatpush2.bf16.msra.mxu0 0
    %133 = vmatprep.subr.bf16.mxu0 0
    %134 = vmatpush2.bf16.msra.mxu0 0
    %135 = vmatprep.subr.bf16.mxu0 0
    %136 = vmatpush2.bf16.msra.mxu0 0
    %137 = vmatprep.subr.bf16.mxu0 0
    %138 = vmatpush2.bf16.msra.mxu0 0
    %139 = vmatprep.subr.bf16.mxu0 0
    %140 = vmatpush2.bf16.msra.mxu0 0
    %141 = vmatprep.mubr.bf16.mxu0 0
    %142 = vmatmul.mubr.bf16.gmra.mxu0 %v103
    %v143 = vpop.f32.mrf.mxu0
    %v144 = vadd.f32 %v90, %v143
    %v145 = vpop.f32.mrf.mxu0
    %v146 = vpop.f32.mrf.mxu0
    %v147 = vpop.f32.mrf.mxu0
    %148 = vdwg.mxu0
    %v149 = vxor.u32 %v144, 2147483648
    %v150 = vmul.f32 %v149, 1.442695
    %v151 = vpow.pop %v150
    %v152 = vadd.f32 %v151, 1.0
    %v153 = vrcp.pop %v152
    %v154 = vmul.f32 1.0, %v153
    %v155 = vmul.f32 %v144, %v154
    %v156 = vpack.c.bf16 %v155, %v155
    %v157 = vld [vmem:[#allocation7] sm:$0xf]
    %v158 = vld [vmem:[#allocation7 + $0x4] sm:$0xf]
    %v159 = vld [vmem:[#allocation7 + $0x8] sm:$0xf]
    %v160 = vld [vmem:[#allocation7 + $0xc] sm:$0xf]
    %v161 = vld [vmem:[#allocation7 + $0x10] sm:$0xf]
    %v162 = vld [vmem:[#allocation7 + $0x14] sm:$0xf]
    %v163 = vld [vmem:[#allocation7 + $0x18] sm:$0xf]
    %v164 = vld [vmem:[#allocation7 + $0x1c] sm:$0xf]
    %v165 = vld [vmem:[#allocation7 + $0x20] sm:$0xf]
    %v166 = vld [vmem:[#allocation7 + $0x24] sm:$0xf]
    %v167 = vld [vmem:[#allocation7 + $0x28] sm:$0xf]
    %v168 = vld [vmem:[#allocation7 + $0x2c] sm:$0xf]
    %v169 = vld [vmem:[#allocation7 + $0x30] sm:$0xf]
    %v170 = vld [vmem:[#allocation7 + $0x34] sm:$0xf]
    %v171 = vld [vmem:[#allocation7 + $0x38] sm:$0xf]
    %v172 = vld [vmem:[#allocation7 + $0x3c] sm:$0xf]
    %v173 = vld [vmem:[%s4] sm:$0x1]
    %v175 = vlaneseq
    %v176 = vshrl.u32 %v175, 7
    %v177 = vsub.s32 0, %v176
    %v178 = vrot.slane %v173, %v177
    %v196 = vunpack.c.l.b16 %v157
    %v197 = vunpack.c.l.b16 %v158
    %v198 = vunpack.c.l.b16 %v159
    %v199 = vunpack.c.l.b16 %v160
    %v200 = vunpack.c.l.b16 %v161
    %v201 = vunpack.c.l.b16 %v162
    %v202 = vunpack.c.l.b16 %v163
    %v203 = vunpack.c.l.b16 %v164
    %v204 = vunpack.c.l.b16 %v165
    %v205 = vunpack.c.l.b16 %v166
    %v206 = vunpack.c.l.b16 %v167
    %v207 = vunpack.c.l.b16 %v168
    %v208 = vunpack.c.l.b16 %v169
    %v209 = vunpack.c.l.b16 %v170
    %v210 = vunpack.c.l.b16 %v171
    %v211 = vunpack.c.l.b16 %v172
    %v212 = vpack.c.b16 %v197, %v196
    %v213 = vpack.c.b16 %v199, %v198
    %v214 = vpack.c.b16 %v201, %v200
    %v215 = vpack.c.b16 %v203, %v202
    %v216 = vpack.c.b16 %v205, %v204
    %v217 = vpack.c.b16 %v207, %v206
    %v218 = vpack.c.b16 %v209, %v208
    %v219 = vpack.c.b16 %v211, %v210
    %228 = vmatprep.subr.bf16.mxu0 0
    %229 = vmatpush1.bf16.msra.mxu0 %v219
    %230 = vmatprep.subr.bf16.mxu0 0
    %231 = vmatpush1.bf16.msra.mxu0 %v218
    %232 = vmatprep.subr.bf16.mxu0 0
    %233 = vmatpush1.bf16.msra.mxu0 %v217
    %234 = vmatprep.subr.bf16.mxu0 0
    %235 = vmatpush1.bf16.msra.mxu0 %v216
    %236 = vmatprep.subr.bf16.mxu0 0
    %237 = vmatpush1.bf16.msra.mxu0 %v215
    %238 = vmatprep.subr.bf16.mxu0 0
    %239 = vmatpush1.bf16.msra.mxu0 %v214
    %240 = vmatprep.subr.bf16.mxu0 0
    %241 = vmatpush1.bf16.msra.mxu0 %v213
    %242 = vmatprep.subr.bf16.mxu0 0
    %243 = vmatpush1.bf16.msra.mxu0 %v212
    %244 = vmatprep.subr.bf16.mxu0 0
    %245 = vmatpush2.bf16.msra.mxu0 0
    %246 = vmatprep.subr.bf16.mxu0 0
    %247 = vmatpush2.bf16.msra.mxu0 0
    %248 = vmatprep.subr.bf16.mxu0 0
    %249 = vmatpush2.bf16.msra.mxu0 0
    %250 = vmatprep.subr.bf16.mxu0 0
    %251 = vmatpush2.bf16.msra.mxu0 0
    %252 = vmatprep.subr.bf16.mxu0 0
    %253 = vmatpush2.bf16.msra.mxu0 0
    %254 = vmatprep.subr.bf16.mxu0 0
    %255 = vmatpush2.bf16.msra.mxu0 0
    %256 = vmatprep.subr.bf16.mxu0 0
    %257 = vmatpush2.bf16.msra.mxu0 0
    %258 = vmatprep.subr.bf16.mxu0 0
    %259 = vmatpush2.bf16.msra.mxu0 0
    %260 = vmatprep.mubr.bf16.mxu0 0
    %261 = vmatmul.mubr.bf16.gmra.mxu0 %v156
    %v262 = vpop.f32.mrf.mxu0
    %v263 = vadd.f32 %v178, %v262
    %v264 = vpop.f32.mrf.mxu0
    %v265 = vpop.f32.mrf.mxu0
    %v266 = vpop.f32.mrf.mxu0
    %267 = vdwg.mxu0
    %v268 = vxor.u32 %v263, 2147483648
    %v269 = vmul.f32 %v268, 1.442695
    %v270 = vpow.pop %v269
    %v271 = vadd.f32 %v270, 1.0
    %v272 = vrcp.pop %v271
    %v273 = vmul.f32 1.0, %v272
    %v274 = vmul.f32 %v263, %v273
    %v275 = vpack.c.bf16 %v274, %v274
    %v276 = vld [vmem:[#allocation8] sm:$0xf]
    %v277 = vld [vmem:[#allocation8 + $0x4] sm:$0xf]
    %v278 = vld [vmem:[#allocation8 + $0x8] sm:$0xf]
    %v279 = vld [vmem:[#allocation8 + $0xc] sm:$0xf]
    %v280 = vld [vmem:[#allocation8 + $0x10] sm:$0xf]
    %v281 = vld [vmem:[#allocation8 + $0x14] sm:$0xf]
    %v282 = vld [vmem:[#allocation8 + $0x18] sm:$0xf]
    %v283 = vld [vmem:[#allocation8 + $0x1c] sm:$0xf]
    %v284 = vld [vmem:[#allocation8 + $0x20] sm:$0xf]
    %v285 = vld [vmem:[#allocation8 + $0x24] sm:$0xf]
    %v286 = vld [vmem:[#allocation8 + $0x28] sm:$0xf]
    %v287 = vld [vmem:[#allocation8 + $0x2c] sm:$0xf]
    %v288 = vld [vmem:[#allocation8 + $0x30] sm:$0xf]
    %v289 = vld [vmem:[#allocation8 + $0x34] sm:$0xf]
    %v290 = vld [vmem:[#allocation8 + $0x38] sm:$0xf]
    %v291 = vld [vmem:[#allocation8 + $0x3c] sm:$0xf]
    %v292 = vld [vmem:[%s6] sm:$0x1]
    %v294 = vlaneseq
    %v295 = vshrl.u32 %v294, 7
    %v296 = vsub.s32 0, %v295
    %v297 = vrot.slane %v292, %v296
    %v315 = vunpack.c.l.b16 %v276
    %v316 = vunpack.c.l.b16 %v277
    %v317 = vunpack.c.l.b16 %v278
    %v318 = vunpack.c.l.b16 %v279
    %v319 = vunpack.c.l.b16 %v280
    %v320 = vunpack.c.l.b16 %v281
    %v321 = vunpack.c.l.b16 %v282
    %v322 = vunpack.c.l.b16 %v283
    %v323 = vunpack.c.l.b16 %v284
    %v324 = vunpack.c.l.b16 %v285
    %v325 = vunpack.c.l.b16 %v286
    %v326 = vunpack.c.l.b16 %v287
    %v327 = vunpack.c.l.b16 %v288
    %v328 = vunpack.c.l.b16 %v289
    %v329 = vunpack.c.l.b16 %v290
    %v330 = vunpack.c.l.b16 %v291
    %v331 = vpack.c.b16 %v316, %v315
    %v332 = vpack.c.b16 %v318, %v317
    %v333 = vpack.c.b16 %v320, %v319
    %v334 = vpack.c.b16 %v322, %v321
    %v335 = vpack.c.b16 %v324, %v323
    %v336 = vpack.c.b16 %v326, %v325
    %v337 = vpack.c.b16 %v328, %v327
    %v338 = vpack.c.b16 %v330, %v329
    %347 = vmatprep.subr.bf16.mxu0 0
    %348 = vmatpush1.bf16.msra.mxu0 %v338
    %349 = vmatprep.subr.bf16.mxu0 0
    %350 = vmatpush1.bf16.msra.mxu0 %v337
    %351 = vmatprep.subr.bf16.mxu0 0
    %352 = vmatpush1.bf16.msra.mxu0 %v336
    %353 = vmatprep.subr.bf16.mxu0 0
    %354 = vmatpush1.bf16.msra.mxu0 %v335
    %355 = vmatprep.subr.bf16.mxu0 0
    %356 = vmatpush1.bf16.msra.mxu0 %v334
    %357 = vmatprep.subr.bf16.mxu0 0
    %358 = vmatpush1.bf16.msra.mxu0 %v333
    %359 = vmatprep.subr.bf16.mxu0 0
    %360 = vmatpush1.bf16.msra.mxu0 %v332
    %361 = vmatprep.subr.bf16.mxu0 0
    %362 = vmatpush1.bf16.msra.mxu0 %v331
    %363 = vmatprep.subr.bf16.mxu0 0
    %364 = vmatpush2.bf16.msra.mxu0 0
    %365 = vmatprep.subr.bf16.mxu0 0
    %366 = vmatpush2.bf16.msra.mxu0 0
    %367 = vmatprep.subr.bf16.mxu0 0
    %368 = vmatpush2.bf16.msra.mxu0 0
    %369 = vmatprep.subr.bf16.mxu0 0
    %370 = vmatpush2.bf16.msra.mxu0 0
    %371 = vmatprep.subr.bf16.mxu0 0
    %372 = vmatpush2.bf16.msra.mxu0 0
    %373 = vmatprep.subr.bf16.mxu0 0
    %374 = vmatpush2.bf16.msra.mxu0 0
    %375 = vmatprep.subr.bf16.mxu0 0
    %376 = vmatpush2.bf16.msra.mxu0 0
    %377 = vmatprep.subr.bf16.mxu0 0
    %378 = vmatpush2.bf16.msra.mxu0 0
    %379 = vmatprep.mubr.bf16.mxu0 0
    %380 = vmatmul.mubr.bf16.gmra.mxu0 %v275
    %v381 = vpop.f32.mrf.mxu0
    %v382 = vadd.f32 %v297, %v381
    %v383 = vpop.f32.mrf.mxu0
    %v384 = vpop.f32.mrf.mxu0
    %v385 = vpop.f32.mrf.mxu0
    %386 = vdwg.mxu0
    %387 = vst [vmem:[#allocation10] sm:$0xff] %v382
    // Predicated region
    $region46: #{tpu_custom_call.1} parent=1 // pred_check
      _
    $region47: #{tpu_custom_call.1} parent=1 // pred_check_branch
      %389 = sbr.rel (0) target = $region49
    $region48: #{tpu_custom_call.1} parent=1 // pred_region
      %s391 = ssub.s32 128, 128
      %392 = vsyncadd [#allocation4], %s391
      %s394 = sshll.u32 [#allocation10], 4
      %s395 = int_to_ptr.vmem [resolvable:$true] %s394
      %397 = dma.vmem_to_hbm [thread:$0]  %s395, 128, %s7, [#allocation4]
    $region49: #{tpu_custom_call.1} parent=1 // pred_fallthru
      _
    // Predicated region
    $region50: #{tpu_custom_call.1} parent=1 // pred_check
      _
    $region51: #{tpu_custom_call.1} parent=1 // pred_check_branch
      %399 = sbr.rel (0) target = $region53
    $region52: #{tpu_custom_call.1} parent=1 // pred_region
      %400 = dma.done [#allocation4], 128
    $region53: #{tpu_custom_call.1} parent=1 // pred_fallthru
      _
    %401 = vsyncpa [#allocation3], 1
    %402 = vsyncpa [#allocation6], 1
    %403 = vsyncpa [#allocation9], 1
    %404 = vsyncpa [#allocation4], 1

</llo_original>
